<compile_context>
chip_gen: v6e
topology: v6e:2x2x1
jax: 0.10.0
libtpu: 0.0.40
codegen_flags: <defaults>
</compile_context>

<pallas_src>
import jax
import jax.numpy as jnp
from jax import lax
from jax.experimental import pallas as pl
from jax.experimental.pallas import tpu as pltpu


def _pairwise_sim_kernel(q_ref, r_ref, o_ref):
    # q_ref: (tq, Dp) raw query tile, r_ref: (tn, Dp) raw reference tile,
    # o_ref: (tq, tn) output tile.  No scratch, no cross-iteration state.
    q = q_ref[...]
    r = r_ref[...]

    # MXU matmul on the raw tiles, contracting the feature dim of both operands
    # directly (no explicit transpose before the MXU).
    sim = lax.dot_general(
        q,
        r,
        dimension_numbers=(((1,), (1,)), ((), ())),
        preferred_element_type=jnp.float32,
    )  # (tq, tn)

    # Post-matmul cosine scaling:  (q.r) / (||q|| * ||r||).
    # rsqrt(max(sum(x*x), 1e-24)) == 1 / max(||x||, 1e-12) to f32 rounding,
    # matching torch.nn.functional.normalize's eps.
    q_inv = lax.rsqrt(jnp.maximum(jnp.sum(q * q, axis=-1, keepdims=True), 1e-24))  # (tq, 1)
    r_inv = lax.rsqrt(jnp.maximum(jnp.sum(r * r, axis=-1, keepdims=True), 1e-24))  # (tn, 1)
    sim = sim * q_inv * jnp.transpose(r_inv)  # row scale x column scale

    # .clamp(min=0.0, max=1.0)
    o_ref[...] = jnp.clip(sim, 0.0, 1.0)


def _round_up(x, m):
    return ((x + m - 1) // m) * m


def _vmem_capacity_bytes():
    """Generation-aware VMEM capacity; falls back to v7x's 64 MiB (smallest)."""
    try:
        info = pltpu.get_tpu_info()
        cap = int(getattr(info, "vmem_capacity_bytes", 0) or 0)
        if cap > 0:
            return cap
    except Exception:
        pass
    return 64 * 1024 * 1024


def _select_tiles(n_query, n_ref, d_pad, budget):
    """Pick (tq, tn): query-tile rows (mult. of 8), reference-tile rows (mult. of 128)."""
    nq8 = _round_up(max(n_query, 1), 8)
    nr128 = _round_up(max(n_ref, 1), 128)

    def footprint(tq_, tn_):
        # Double-buffered q / r / out tiles + ~1 extra (tq, tn) f32 for the
        # matmul-result temporary kept before the scale/clip/store.
        return 4 * (2 * tq_ * d_pad + 2 * tn_ * d_pad + 3 * tq_ * tn_)

    tn = 128
    if footprint(nq8, tn) <= budget:
        # Query fully resident: constant block index -> fetched from HBM once.
        tq = nq8
    else:
        tq = max(8, (min(256, nq8) // 8) * 8)
        # Shrink tq, never tn: q-re-read HBM traffic scales with 1/tn, not 1/tq.
        while footprint(tq, tn) > budget and tq > 8:
            tq = max(8, ((tq // 2) // 8) * 8)

    # Grow tn (lane-dense multiples of 128) while it fits; larger tn divides the
    # query re-read factor and amortizes per-grid-step overhead.
    tn_cap = min(nr128, 2048)
    while tn * 2 <= tn_cap and footprint(tq, tn * 2) <= budget:
        tn *= 2
    if tn < tn_cap and footprint(tq, tn_cap) <= budget:
        tn = tn_cap
    return tq, tn


def pairwise_similarity(query_descriptors, reference_descriptors):
    """Pallas implementation of PairwiseSimilarity.forward (metric='cosine')."""
    n_query, d = query_descriptors.shape
    n_objects, n_templates, d2 = reference_descriptors.shape
    assert d == d2, "feature dims must match"
    n_ref = n_objects * n_templates

    # Pad the feature dim to the 128-wide lane; zero columns change neither
    # norms nor dot products.
    d_pad = _round_up(d, 128)

    vmem_cap = _vmem_capacity_bytes()
    budget = int(0.55 * vmem_cap)       # tile-footprint budget
    vmem_limit = int(0.75 * vmem_cap)   # scoped limit, headroom for Mosaic scratch

    tq, tn = _select_tiles(n_query, n_ref, d_pad, budget)
    nq_pad = _round_up(n_query, tq)
    nr_pad = _round_up(n_ref, tn)

    # Wrapper-side copies only when they change something.
    q = query_descriptors
    if q.dtype != jnp.float32:
        q = q.astype(jnp.float32)
    if nq_pad != n_query or d_pad != d:
        q = jnp.pad(q, ((0, nq_pad - n_query), (0, d_pad - d)))

    r = reference_descriptors.reshape(n_ref, d)
    if r.dtype != jnp.float32:
        r = r.astype(jnp.float32)
    if nr_pad != n_ref or d_pad != d:
        r = jnp.pad(r, ((0, nr_pad - n_ref), (0, d_pad - d)))

    r_tiles = nr_pad // tn
    q_tiles = nq_pad // tq
    grid = (r_tiles, q_tiles)  # reference tiles outer, query tiles inner

    # Honest traffic estimate: q is re-read once per reference tile unless it is
    # fully resident (single query tile / constant block index).
    q_reads = 1 if q_tiles == 1 else r_tiles
    cost = pl.CostEstimate(
        flops=2 * nq_pad * nr_pad * d_pad,
        transcendentals=nq_pad * r_tiles + nr_pad * q_tiles,
        bytes_accessed=4 * (nq_pad * d_pad * q_reads + nr_pad * d_pad + nq_pad * nr_pad),
    )

    out_flat = pl.pallas_call(
        _pairwise_sim_kernel,
        out_shape=jax.ShapeDtypeStruct((nq_pad, nr_pad), jnp.float32),
        grid_spec=pltpu.PrefetchScalarGridSpec(
            num_scalar_prefetch=0,
            grid=grid,
            in_specs=[
                pl.BlockSpec((tq, d_pad), lambda rj, qi: (qi, 0)),
                pl.BlockSpec((tn, d_pad), lambda rj, qi: (rj, 0)),
            ],
            out_specs=pl.BlockSpec((tq, tn), lambda rj, qi: (qi, rj)),
        ),
        compiler_params=pltpu.CompilerParams(
            # No cross-iteration state -> both grid axes are independent; lets
            # the runtime shard whichever axis is larger across TensorCores.
            dimension_semantics=("parallel", "parallel"),
            vmem_limit_bytes=vmem_limit,
        ),
        cost_estimate=cost,
    )(q, r)

    if nq_pad != n_query or nr_pad != n_ref:
        out_flat = out_flat[:n_query, :n_ref]
    return out_flat.reshape(n_query, n_objects, n_templates)


def _reference_jax(query, reference):
    """Pure-JAX reference mirroring the PyTorch forward exactly."""
    qn = query / jnp.maximum(jnp.linalg.norm(query, axis=-1, keepdims=True), 1e-12)
    rn = reference / jnp.maximum(
        jnp.linalg.norm(reference, axis=-1, keepdims=True), 1e-12
    )
    sim = jnp.einsum("qd,otd->qot", qn, rn)
    return jnp.clip(sim, 0.0, 1.0)


if __name__ == "__main__":
    key = jax.random.PRNGKey(0)
    k_q, k_r = jax.random.split(key)

    N_query, N_objects, N_templates, D = 8, 4, 8, 32
    query = jax.random.normal(k_q, (N_query, D), dtype=jnp.float32)
    reference = jax.random.normal(k_r, (N_objects, N_templates, D), dtype=jnp.float32)

    out = pairwise_similarity(query, reference)
    out = jax.block_until_ready(out)

    ref_out = _reference_jax(query, reference)
    assert out.shape == (N_query, N_objects, N_templates), out.shape
    assert jnp.allclose(out, ref_out, atol=1e-5, rtol=1e-5), "mismatch vs reference"

    print("KERNEL_OK")
</pallas_src>

<mosaic_0001>
module attributes {stable_mosaic.version = 11 : i64} {
  func.func @_pairwise_sim_kernel(%arg0: i32, %arg1: i32, %arg2: memref<8x128xf32, #tpu.memory_space<vmem>>, %arg3: memref<128x128xf32, #tpu.memory_space<vmem>>, %arg4: memref<8x128xf32, #tpu.memory_space<vmem>>) attributes {dimension_semantics = [#tpu.dimension_semantics<parallel>, #tpu.dimension_semantics<parallel>], iteration_bounds = array<i64: 1, 1>, scalar_prefetch = 0 : i64, scratch_operands = 0 : i64, tpu.core_type = #tpu.core_type<tc>, window_params = [{transform_indices = @transform_0, window_bounds = array<i64: 8, 128>}, {transform_indices = @transform_1, window_bounds = array<i64: 128, 128>}, {transform_indices = @transform_2, window_bounds = array<i64: 8, 128>}]} {
    %c0 = arith.constant 0 : index
    %c0_0 = arith.constant 0 : index
    %0 = vector.load %arg2[%c0, %c0_0] : memref<8x128xf32, #tpu.memory_space<vmem>>, vector<8x128xf32>
    %c0_1 = arith.constant 0 : index
    %c0_2 = arith.constant 0 : index
    %1 = vector.load %arg3[%c0_1, %c0_2] : memref<128x128xf32, #tpu.memory_space<vmem>>, vector<128x128xf32>
    %cst = arith.constant dense<0.000000e+00> : vector<8x128xf32>
    %2 = tpu.matmul %0, %1, %cst {dimension_numbers = #tpu.dot_dimension_numbers<[1], [1], [0], [0], [0, 0, 1, 0], [], []>} : vector<8x128xf32>, vector<128x128xf32>, vector<8x128xf32> -> vector<8x128xf32>
    %3 = arith.mulf %0, %0 : vector<8x128xf32>
    %cst_3 = arith.constant dense<0.000000e+00> : vector<8xf32>
    %4 = vector.multi_reduction <add>, %3, %cst_3 [1] : vector<8x128xf32> to vector<8xf32>
    %5 = vector.shape_cast %4 : vector<8xf32> to vector<8x1xf32>
    %cst_4 = arith.constant 1.000000e-24 : f32
    %6 = vector.broadcast %cst_4 : f32 to vector<8x1xf32>
    %7 = arith.maximumf %5, %6 : vector<8x1xf32>
    %8 = math.rsqrt %7 : vector<8x1xf32>
    %9 = arith.mulf %1, %1 : vector<128x128xf32>
    %cst_5 = arith.constant dense<0.000000e+00> : vector<128xf32>
    %10 = vector.multi_reduction <add>, %9, %cst_5 [1] : vector<128x128xf32> to vector<128xf32>
    %11 = vector.shape_cast %10 : vector<128xf32> to vector<128x1xf32>
    %cst_6 = arith.constant 1.000000e-24 : f32
    %12 = vector.broadcast %cst_6 : f32 to vector<128x1xf32>
    %13 = arith.maximumf %11, %12 : vector<128x1xf32>
    %14 = math.rsqrt %13 : vector<128x1xf32>
    %15 = vector.broadcast %8 : vector<8x1xf32> to vector<8x128xf32>
    %16 = arith.mulf %2, %15 : vector<8x128xf32>
    %17 = tpu.transpose %14, [1, 0] : vector<128x1xf32> -> vector<1x128xf32>
    %18 = vector.broadcast %17 : vector<1x128xf32> to vector<8x128xf32>
    %19 = arith.mulf %16, %18 : vector<8x128xf32>
    %cst_7 = arith.constant 0.000000e+00 : f32
    %cst_8 = arith.constant 1.000000e+00 : f32
    %20 = vector.broadcast %cst_7 : f32 to vector<8x128xf32>
    %21 = arith.maximumf %20, %19 : vector<8x128xf32>
    %22 = vector.broadcast %cst_8 : f32 to vector<8x128xf32>
    %23 = arith.minimumf %22, %21 : vector<8x128xf32>
    %c0_9 = arith.constant 0 : index
    %c0_10 = arith.constant 0 : index
    %24 = vector.load %arg4[%c0_9, %c0_10] : memref<8x128xf32, #tpu.memory_space<vmem>>, vector<8x128xf32>
    tpu.vector_store %arg4[%c0_9, %c0_10], %23 {strides = array<i32>} : memref<8x128xf32, #tpu.memory_space<vmem>>, vector<8x128xf32>,
    return
  }
  func.func @transform_0(%arg0: i32, %arg1: i32) -> (i32, i32) {
    %c0_i32 = arith.constant 0 : i32
    %c0_i32_0 = arith.constant 0 : i32
    return %arg1, %c0_i32 : i32, i32
  }
  func.func @transform_1(%arg0: i32, %arg1: i32) -> (i32, i32) {
    %c0_i32 = arith.constant 0 : i32
    %c0_i32_0 = arith.constant 0 : i32
    return %arg0, %c0_i32 : i32, i32
  }
  func.func @transform_2(%arg0: i32, %arg1: i32) -> (i32, i32) {
    %c0_i32 = arith.constant 0 : i32
    return %arg1, %arg0 : i32, i32
  }
}

</mosaic_0001>

<llo_original>
// kernel: tpu_custom_call.1
$region0: #{tpu_custom_call.1}
  #allocation0 [shape = 'u32[]', space=smem, size = 0x4, offset = 0x4, fixed_abs, tag = 'smem constant byte address 0x4 - core index']
  #allocation1 [shape = 'u32[144,128]{1,0:T(1,128)}', space=vmem, size = 0x12000, scoped, tag = 'internal scratch']
  %s0 = inlined_call_operand.hbm [shape: f32[8,128], index: 0, kind: input, shape index: {}]
  %s1 = inlined_call_operand.hbm [shape: f32[128,128], index: 1, kind: input, shape index: {}]
  %s2 = inlined_call_operand.hbm [shape: f32[8,128], index: 2, kind: output, shape index: {}]
  %s3 = sld [smem:[#allocation0]]
  $region26: #{tpu_custom_call.1} parent=0
    _
  %s5 = ssub.s32 1, %s3
  %s6 = scalar_select 0, %s5, %s3
  $region1: #{tpu_custom_call.1} parent=0
    #allocation2 [shape = 'u8[4096]{0}', space=vmem, size = 0x1000, scoped, tag = 'input window, operand 0, single buffered']
    #allocation3 [shape = 's32[1]{0}', space=sflag, size = 0x4, scoped, tag = 'scoped memory for tpu_custom_call.1']
    #allocation4 [shape = 's32[1]{0}', space=sflag, size = 0x4, scoped, tag = 'scoped memory for tpu_custom_call.1']
    #allocation5 [shape = 'u8[65536]{0}', space=vmem, size = 0x10000, scoped, tag = 'input window, operand 1, single buffered']
    #allocation6 [shape = 's32[1]{0}', space=sflag, size = 0x4, scoped, tag = 'scoped memory for tpu_custom_call.1']
    #allocation7 [shape = 'u8[4096]{0}', space=vmem, size = 0x1000, scoped, tag = 'output window, operand 0, single buffered']
    %7 = vsyncpa [#allocation3], 0
    %8 = vsyncpa [#allocation6], 0
    %9 = vsyncpa [#allocation4], 0
    // Predicated region
    $region2: #{tpu_custom_call.1} parent=1 // pred_check
      _
    $region3: #{tpu_custom_call.1} parent=1 // pred_check_branch
      %11 = sbr.rel (0) target = $region5
    $region4: #{tpu_custom_call.1} parent=1 // pred_region
      %s13 = ssub.s32 128, 128
      %14 = vsyncadd [#allocation3], %s13
      %s16 = sshll.u32 [#allocation2], 4
      %s17 = int_to_ptr.vmem [resolvable:$true] %s16
      %19 = dma.hbm_to_vmem [thread:$0]  %s0, 128, %s17, [#allocation3]
    $region5: #{tpu_custom_call.1} parent=1 // pred_fallthru
      _
    // Predicated region
    $region6: #{tpu_custom_call.1} parent=1 // pred_check
      _
    $region7: #{tpu_custom_call.1} parent=1 // pred_check_branch
      %21 = sbr.rel (0) target = $region9
    $region8: #{tpu_custom_call.1} parent=1 // pred_region
      %s23 = ssub.s32 2048, 2048
      %24 = vsyncadd [#allocation6], %s23
      %s25 = sshll.u32 [#allocation5], 4
      %s26 = int_to_ptr.vmem [resolvable:$true] %s25
      %31 = dma.hbm_to_vmem [thread:$0]  %s1, 2048, %s26, [#allocation6], 128, 128, 8
    $region9: #{tpu_custom_call.1} parent=1 // pred_fallthru
      _
    // Predicated region
    $region10: #{tpu_custom_call.1} parent=1 // pred_check
      _
    $region11: #{tpu_custom_call.1} parent=1 // pred_check_branch
      %33 = sbr.rel (0) target = $region13
    $region12: #{tpu_custom_call.1} parent=1 // pred_region
      %34 = dma.done [#allocation3], 128
    $region13: #{tpu_custom_call.1} parent=1 // pred_fallthru
      _
    // Predicated region
    $region14: #{tpu_custom_call.1} parent=1 // pred_check
      _
    $region15: #{tpu_custom_call.1} parent=1 // pred_check_branch
      %36 = sbr.rel (0) target = $region17
    $region16: #{tpu_custom_call.1} parent=1 // pred_region
      %37 = dma.done [#allocation6], 2048
    $region17: #{tpu_custom_call.1} parent=1 // pred_fallthru
      _
    %v38 = vld [vmem:[#allocation2] sm:$0xff]
    %v39 = vld [vmem:[#allocation5] sm:$0xff]
    %v40 = vld [vmem:[#allocation5 + $0x8] sm:$0xff]
    %v41 = vld [vmem:[#allocation5 + $0x10] sm:$0xff]
    %v42 = vld [vmem:[#allocation5 + $0x18] sm:$0xff]
    %v43 = vld [vmem:[#allocation5 + $0x20] sm:$0xff]
    %v44 = vld [vmem:[#allocation5 + $0x28] sm:$0xff]
    %v45 = vld [vmem:[#allocation5 + $0x30] sm:$0xff]
    %v46 = vld [vmem:[#allocation5 + $0x38] sm:$0xff]
    %v47 = vld [vmem:[#allocation5 + $0x40] sm:$0xff]
    %v48 = vld [vmem:[#allocation5 + $0x48] sm:$0xff]
    %v49 = vld [vmem:[#allocation5 + $0x50] sm:$0xff]
    %v50 = vld [vmem:[#allocation5 + $0x58] sm:$0xff]
    %v51 = vld [vmem:[#allocation5 + $0x60] sm:$0xff]
    %v52 = vld [vmem:[#allocation5 + $0x68] sm:$0xff]
    %v53 = vld [vmem:[#allocation5 + $0x70] sm:$0xff]
    %v54 = vld [vmem:[#allocation5 + $0x78] sm:$0xff]
    %55 = vmatprep.subr.mxu0 0.0
    %56 = vmatpush1.xpose.msra.mxu0 %v54
    %57 = vmatprep.subr.mxu0 0.0
    %58 = vmatpush1.xpose.msra.mxu0 %v53
    %59 = vmatprep.subr.mxu0 0.0
    %60 = vmatpush1.xpose.msra.mxu0 %v52
    %61 = vmatprep.subr.mxu0 0.0
    %62 = vmatpush1.xpose.msra.mxu0 %v51
    %63 = vmatprep.subr.mxu0 0.0
    %64 = vmatpush1.xpose.msra.mxu0 %v50
    %65 = vmatprep.subr.mxu0 0.0
    %66 = vmatpush1.xpose.msra.mxu0 %v49
    %67 = vmatprep.subr.mxu0 0.0
    %68 = vmatpush1.xpose.msra.mxu0 %v48
    %69 = vmatprep.subr.mxu0 0.0
    %70 = vmatpush1.xpose.msra.mxu0 %v47
    %71 = vmatprep.subr.mxu0 0.0
    %72 = vmatpush1.xpose.msra.mxu0 %v46
    %73 = vmatprep.subr.mxu0 0.0
    %74 = vmatpush1.xpose.msra.mxu0 %v45
    %75 = vmatprep.subr.mxu0 0.0
    %76 = vmatpush1.xpose.msra.mxu0 %v44
    %77 = vmatprep.subr.mxu0 0.0
    %78 = vmatpush1.xpose.msra.mxu0 %v43
    %79 = vmatprep.subr.mxu0 0.0
    %80 = vmatpush1.xpose.msra.mxu0 %v42
    %81 = vmatprep.subr.mxu0 0.0
    %82 = vmatpush1.xpose.msra.mxu0 %v41
    %83 = vmatprep.subr.mxu0 0.0
    %84 = vmatpush1.xpose.msra.mxu0 %v40
    %85 = vmatprep.subr.mxu0 0.0
    %86 = vmatpush1.xpose.msra.mxu0 %v39
    %87 = vmatprep.subr.mxu0 0.0
    %88 = vmatpush2.xpose.msra.mxu0 0.0
    %89 = vmatprep.subr.mxu0 0.0
    %90 = vmatpush2.xpose.msra.mxu0 0.0
    %91 = vmatprep.subr.mxu0 0.0
    %92 = vmatpush2.xpose.msra.mxu0 0.0
    %93 = vmatprep.subr.mxu0 0.0
    %94 = vmatpush2.xpose.msra.mxu0 0.0
    %95 = vmatprep.subr.mxu0 0.0
    %96 = vmatpush2.xpose.msra.mxu0 0.0
    %97 = vmatprep.subr.mxu0 0.0
    %98 = vmatpush2.xpose.msra.mxu0 0.0
    %99 = vmatprep.subr.mxu0 0.0
    %100 = vmatpush2.xpose.msra.mxu0 0.0
    %101 = vmatprep.subr.mxu0 0.0
    %102 = vmatpush2.xpose.msra.mxu0 0.0
    %103 = vmatprep.subr.mxu0 0.0
    %104 = vmatpush2.xpose.msra.mxu0 0.0
    %105 = vmatprep.subr.mxu0 0.0
    %106 = vmatpush2.xpose.msra.mxu0 0.0
    %107 = vmatprep.subr.mxu0 0.0
    %108 = vmatpush2.xpose.msra.mxu0 0.0
    %109 = vmatprep.subr.mxu0 0.0
    %110 = vmatpush2.xpose.msra.mxu0 0.0
    %111 = vmatprep.subr.mxu0 0.0
    %112 = vmatpush2.xpose.msra.mxu0 0.0
    %113 = vmatprep.subr.mxu0 0.0
    %114 = vmatpush2.xpose.msra.mxu0 0.0
    %115 = vmatprep.subr.mxu0 0.0
    %116 = vmatpush2.xpose.msra.mxu0 0.0
    %117 = vmatprep.subr.mxu0 0.0
    %118 = vmatpush2.xpose.msra.mxu0 0.0
    %119 = vmatprep.mubr.f32.mxu0 0.0
    %120 = vmatmul.mubr.f32.gmra.mxu0 %v38
    %v121 = vpop.f32.mrf.mxu0
    %v122 = vadd.f32 0.0, %v121
    %v123 = vpop.f32.mrf.mxu0
    %124 = vdwg.mxu0
    %v125 = vmul.f32 %v38, %v38
    %126 = vadd.xlane.f32.xlu0 %v125
    %v127 = vpop.xlane.xlu0 %126
    %v128 = vmax.f32 %v127, 1e-24
    %v129 = vrsqrt.pop %v128
    %v130 = vmul.f32 %v39, %v39
    %v131 = vmul.f32 %v40, %v40
    %v132 = vmul.f32 %v41, %v41
    %v133 = vmul.f32 %v42, %v42
    %v134 = vmul.f32 %v43, %v43
    %v135 = vmul.f32 %v44, %v44
    %v136 = vmul.f32 %v45, %v45
    %v137 = vmul.f32 %v46, %v46
    %v138 = vmul.f32 %v47, %v47
    %v139 = vmul.f32 %v48, %v48
    %v140 = vmul.f32 %v49, %v49
    %v141 = vmul.f32 %v50, %v50
    %v142 = vmul.f32 %v51, %v51
    %v143 = vmul.f32 %v52, %v52
    %v144 = vmul.f32 %v53, %v53
    %v145 = vmul.f32 %v54, %v54
    %146 = vadd.xlane.f32.xlu0 %v130
    %v147 = vpop.xlane.xlu0 %146
    %148 = vadd.xlane.f32.xlu0 %v131
    %v149 = vpop.xlane.xlu0 %148
    %150 = vadd.xlane.f32.xlu0 %v132
    %v151 = vpop.xlane.xlu0 %150
    %152 = vadd.xlane.f32.xlu0 %v133
    %v153 = vpop.xlane.xlu0 %152
    %154 = vadd.xlane.f32.xlu0 %v134
    %v155 = vpop.xlane.xlu0 %154
    %156 = vadd.xlane.f32.xlu0 %v135
    %v157 = vpop.xlane.xlu0 %156
    %158 = vadd.xlane.f32.xlu0 %v136
    %v159 = vpop.xlane.xlu0 %158
    %160 = vadd.xlane.f32.xlu0 %v137
    %v161 = vpop.xlane.xlu0 %160
    %162 = vadd.xlane.f32.xlu0 %v138
    %v163 = vpop.xlane.xlu0 %162
    %164 = vadd.xlane.f32.xlu0 %v139
    %v165 = vpop.xlane.xlu0 %164
    %166 = vadd.xlane.f32.xlu0 %v140
    %v167 = vpop.xlane.xlu0 %166
    %168 = vadd.xlane.f32.xlu0 %v141
    %v169 = vpop.xlane.xlu0 %168
    %170 = vadd.xlane.f32.xlu0 %v142
    %v171 = vpop.xlane.xlu0 %170
    %172 = vadd.xlane.f32.xlu0 %v143
    %v173 = vpop.xlane.xlu0 %172
    %174 = vadd.xlane.f32.xlu0 %v144
    %v175 = vpop.xlane.xlu0 %174
    %176 = vadd.xlane.f32.xlu0 %v145
    %v177 = vpop.xlane.xlu0 %176
    %v178 = vmax.f32 %v147, 1e-24
    %v179 = vmax.f32 %v149, 1e-24
    %v180 = vmax.f32 %v151, 1e-24
    %v181 = vmax.f32 %v153, 1e-24
    %v182 = vmax.f32 %v155, 1e-24
    %v183 = vmax.f32 %v157, 1e-24
    %v184 = vmax.f32 %v159, 1e-24
    %v185 = vmax.f32 %v161, 1e-24
    %v186 = vmax.f32 %v163, 1e-24
    %v187 = vmax.f32 %v165, 1e-24
    %v188 = vmax.f32 %v167, 1e-24
    %v189 = vmax.f32 %v169, 1e-24
    %v190 = vmax.f32 %v171, 1e-24
    %v191 = vmax.f32 %v173, 1e-24
    %v192 = vmax.f32 %v175, 1e-24
    %v193 = vmax.f32 %v177, 1e-24
    %v194 = vrsqrt.pop %v178
    %v195 = vrsqrt.pop %v179
    %v196 = vrsqrt.pop %v180
    %v197 = vrsqrt.pop %v181
    %v198 = vrsqrt.pop %v182
    %v199 = vrsqrt.pop %v183
    %v200 = vrsqrt.pop %v184
    %v201 = vrsqrt.pop %v185
    %v202 = vrsqrt.pop %v186
    %v203 = vrsqrt.pop %v187
    %v204 = vrsqrt.pop %v188
    %v205 = vrsqrt.pop %v189
    %v206 = vrsqrt.pop %v190
    %v207 = vrsqrt.pop %v191
    %v208 = vrsqrt.pop %v192
    %v209 = vrsqrt.pop %v193
    %v210 = vmul.f32 %v122, %v129
    %211 = vxpose.xlu0.b32.start [1/16] %v194, 128
    %212 = vxpose.xlu0.b32.cont [2/16] %v195, 128
    %213 = vxpose.xlu0.b32.cont [3/16] %v196, 128
    %214 = vxpose.xlu0.b32.cont [4/16] %v197, 128
    %215 = vxpose.xlu0.b32.cont [5/16] %v198, 128
    %216 = vxpose.xlu0.b32.cont [6/16] %v199, 128
    %217 = vxpose.xlu0.b32.cont [7/16] %v200, 128
    %218 = vxpose.xlu0.b32.cont [8/16] %v201, 128
    %219 = vxpose.xlu0.b32.cont [9/16] %v202, 128
    %220 = vxpose.xlu0.b32.cont [10/16] %v203, 128
    %221 = vxpose.xlu0.b32.cont [11/16] %v204, 128
    %222 = vxpose.xlu0.b32.cont [12/16] %v205, 128
    %223 = vxpose.xlu0.b32.cont [13/16] %v206, 128
    %224 = vxpose.xlu0.b32.cont [14/16] %v207, 128
    %225 = vxpose.xlu0.b32.cont [15/16] %v208, 128
    %226 = vxpose.xlu0.b32.end [16/16] %v209, 128
    %v227 = vpop.trf.xlu0
    %v228 = vpop.trf.xlu0
    %v229 = vpop.trf.xlu0
    %v230 = vpop.trf.xlu0
    %v231 = vpop.trf.xlu0
    %v232 = vpop.trf.xlu0
    %v233 = vpop.trf.xlu0
    %v234 = vpop.trf.xlu0
    %v235 = vpop.trf.xlu0
    %v236 = vpop.trf.xlu0
    %v237 = vpop.trf.xlu0
    %v238 = vpop.trf.xlu0
    %v239 = vpop.trf.xlu0
    %v240 = vpop.trf.xlu0
    %v241 = vpop.trf.xlu0
    %v242 = vpop.trf.xlu0
    %v243 = vlaneseq
    %v244 = vshrl.u32 %v243, 7
    %v245 = vsub.s32 0, %v244
    %v246 = vrot.slane %v227, %v245
    %v247 = vmul.f32 %v210, %v246
    %v248 = vmax.f32 %v247, 0.0
    %v249 = vmin.f32 %v248, 1.0
    %250 = vst [vmem:[#allocation7] sm:$0xff] %v249
    // Predicated region
    $region18: #{tpu_custom_call.1} parent=1 // pred_check
      _
    $region19: #{tpu_custom_call.1} parent=1 // pred_check_branch
      %252 = sbr.rel (0) target = $region21
    $region20: #{tpu_custom_call.1} parent=1 // pred_region
      %s254 = ssub.s32 128, 128
      %255 = vsyncadd [#allocation4], %s254
      %s257 = sshll.u32 [#allocation7], 4
      %s258 = int_to_ptr.vmem [resolvable:$true] %s257
      %260 = dma.vmem_to_hbm [thread:$0]  %s258, 128, %s2, [#allocation4]
    $region21: #{tpu_custom_call.1} parent=1 // pred_fallthru
      _
    // Predicated region
    $region22: #{tpu_custom_call.1} parent=1 // pred_check
      _
    $region23: #{tpu_custom_call.1} parent=1 // pred_check_branch
      %262 = sbr.rel (0) target = $region25
    $region24: #{tpu_custom_call.1} parent=1 // pred_region
      %263 = dma.done [#allocation4], 128
    $region25: #{tpu_custom_call.1} parent=1 // pred_fallthru
      _
    %264 = vsyncpa [#allocation3], 1
    %265 = vsyncpa [#allocation6], 1
    %266 = vsyncpa [#allocation4], 1

</llo_original>
